<compile_context>
chip_gen: v6e
topology: v6e:2x2x1
jax: 0.10.0
libtpu: 0.0.40
codegen_flags: <defaults>
</compile_context>

<pallas_src>
import jax
import jax.numpy as jnp
from jax.experimental import pallas as pl
from jax.experimental.pallas import tpu as pltpu


# Packed parameter layout inside the single (32, 128) f32 buffer:
#   rows  0: 8, cols 0: 4  -> W1 (8, 4)     rows  0: 8, col 32 -> b1 (8,)
#   rows  8:24, cols 0: 8  -> W2 (16, 8)    rows  8:24, col 32 -> b2 (16,)
#   rows 24:31, cols 0:16  -> W3 (7, 16)    rows 24:31, col 32 -> b3 (7,)
#   (row 31 of the W3/b3 slab is zero padding -> its q-row is exactly 0)
_BIAS_COL = 32


def _round_up(x, m):
    return ((x + m - 1) // m) * m


def _make_dqn_kernel(tb, mask_mode):
    chunks = tb // 128

    def _chunk_sum(q):
        # Reduce (8, tb) -> (8, 128) with static 128-lane slices: pure VPU vreg adds,
        # no relayout; per-tile output stays one lane-dense (8,128) block for any tb.
        p = q[:, 0:128]
        for c in range(1, chunks):
            p = p + q[:, c * 128:(c + 1) * 128]
        return p

    def dqn_kernel(n_ref, params_ref, xt_ref, o_ref):
        i = pl.program_id(0)

        # Static slices of the single resident packed-parameter VMEM block.
        w1 = params_ref[0:8, 0:4]                          # (8, 4)
        b1 = params_ref[0:8, _BIAS_COL:_BIAS_COL + 1]      # (8, 1)
        w2 = params_ref[8:24, 0:8]                         # (16, 8)
        b2 = params_ref[8:24, _BIAS_COL:_BIAS_COL + 1]     # (16, 1)
        w3 = params_ref[24:32, 0:16]                       # (8, 16) row 7 zero-padded
        b3 = params_ref[24:32, _BIAS_COL:_BIAS_COL + 1]    # (8, 1)  row 7 zero

        xt = xt_ref[...]                                   # (4, tb) feature-major
        h1 = jnp.maximum(
            jnp.dot(w1, xt, preferred_element_type=jnp.float32) + b1, 0.0)   # (8, tb)
        h2 = jnp.maximum(
            jnp.dot(w2, h1, preferred_element_type=jnp.float32) + b2, 0.0)   # (16, tb)
        q = jnp.dot(w3, h2, preferred_element_type=jnp.float32) + b3         # (8, tb)

        def _masked(qv):
            # Zero batch lanes >= n (ragged edge block garbage / caller padding).
            lane = jax.lax.broadcasted_iota(jnp.int32, (1, tb), 1)
            valid = (i * tb + lane) < n_ref[0]
            return jnp.where(valid, qv, 0.0)

        if mask_mode == "none":
            o_ref[...] = _chunk_sum(q)
        elif mask_mode == "all":
            o_ref[...] = _chunk_sum(_masked(q))
        else:  # "last": only the final (possibly partial) tile needs the mask.
            last = pl.num_programs(0) - 1

            @pl.when(i != last)
            def _():
                o_ref[...] = _chunk_sum(q)

            @pl.when(i == last)
            def _():
                o_ref[...] = _chunk_sum(_masked(q))

    return dqn_kernel


def dqn_forward_t(xt, packed_params, *, n=None, tb_cap=8192):
    """Feature-major entry point: xt is (4, B) float32 (no wrapper copies).

    n: true batch size.  A Python int (or None -> xt.shape[1]) keeps everything
    static; a traced scalar lets a fixed-shape pre-padded xt be reused across batch
    sizes without retracing (n is read from SMEM in-kernel for the lane mask).
    """
    ncols = xt.shape[1]
    static_n = n is None or isinstance(n, int)
    if n is None:
        n = ncols

    tb = max(128, min(_round_up(int(tb_cap), 128), _round_up(ncols, 128)))
    ntiles = pl.cdiv(ncols, tb)

    if (not static_n) or n != ncols:
        mask_mode = "all"        # padding lanes may appear on any tile
    elif ncols % tb == 0:
        mask_mode = "none"       # no partial edge block at all
    else:
        mask_mode = "last"       # only the final tile is ragged

    # VMEM estimate: xt double-buffer (2*16*tb) + f32 activations (~128*tb) + slack.
    cp_kwargs = dict(dimension_semantics=("parallel",))
    est_vmem = 240 * tb + (2 << 20)
    if est_vmem > (16 << 20):    # only needed when tb_cap is pushed very large
        cp_kwargs["vmem_limit_bytes"] = int(min(64 << 20, est_vmem))

    n_arr = jnp.asarray(n, jnp.int32).reshape(1)

    partials = pl.pallas_call(
        _make_dqn_kernel(tb, mask_mode),
        out_shape=jax.ShapeDtypeStruct((ntiles, 8, 128), jnp.float32),
        grid_spec=pltpu.PrefetchScalarGridSpec(
            num_scalar_prefetch=1,
            grid=(ntiles,),
            in_specs=[
                # One packed params block, same index every step -> single DMA, resident.
                pl.BlockSpec((32, 128), lambda i, n_ref: (0, 0)),
                # Streamed, pipelined batch tiles (batch on the 128-wide lane axis).
                pl.BlockSpec((4, tb), lambda i, n_ref: (0, i)),
            ],
            # One lane-dense (8,128) partial-sum block per tile; the "parallel" axis
            # lets v7x split tiles across both TensorCores.
            out_specs=pl.BlockSpec((None, 8, 128), lambda i, n_ref: (i, 0, 0)),
        ),
        compiler_params=pltpu.CompilerParams(**cp_kwargs),
    )(n_arr, packed_params, xt)

    # Tiny cross-tile + cross-lane reduction and a single exact 1/n, done once outside.
    q_sum = jnp.sum(partials, axis=(0, 2))[:7]             # (7,)
    return q_sum / jnp.asarray(n, jnp.float32)


def dqn_forward(x, packed_params, *, n=None, tb_cap=8192):
    """x: (B, 4) float32.  packed_params: (32, 128) f32 packed weights+biases."""
    # Single transposed copy (no zero-pad pass).  For zero wrapper copies, produce
    # feature-major activations upstream and call dqn_forward_t directly.
    return dqn_forward_t(x.T, packed_params, n=n, tb_cap=tb_cap)


def init_params(key):
    """PyTorch-style Linear params: weight (out, in), bias (out,), U(+/-1/sqrt(fan_in))."""
    dims = [(4, 8), (8, 16), (16, 7)]
    params = {}
    for i, (fan_in, fan_out) in enumerate(dims, start=1):
        key, kw, kb = jax.random.split(key, 3)
        bound = 1.0 / (fan_in ** 0.5)
        params[f"w{i}"] = jax.random.uniform(
            kw, (fan_out, fan_in), jnp.float32, -bound, bound)
        params[f"b{i}"] = jax.random.uniform(
            kb, (fan_out,), jnp.float32, -bound, bound)
    return params


def pack_params(params):
    """Assemble the single (32, 128) packed parameter buffer (done once, outside kernel)."""
    packed = jnp.zeros((32, 128), jnp.float32)
    packed = packed.at[0:8, 0:4].set(params["w1"])
    packed = packed.at[0:8, _BIAS_COL].set(params["b1"])
    packed = packed.at[8:24, 0:8].set(params["w2"])
    packed = packed.at[8:24, _BIAS_COL].set(params["b2"])
    packed = packed.at[24:31, 0:16].set(params["w3"])
    packed = packed.at[24:31, _BIAS_COL].set(params["b3"])
    return packed


def dqn_reference(x, params):
    h1 = jnp.maximum(x @ params["w1"].T + params["b1"], 0.0)
    h2 = jnp.maximum(h1 @ params["w2"].T + params["b2"], 0.0)
    q = h2 @ params["w3"].T + params["b3"]
    return jnp.mean(q, axis=0)


if __name__ == "__main__":
    key = jax.random.PRNGKey(0)
    key, kx = jax.random.split(key)
    params = init_params(key)
    packed = pack_params(params)

    # 1) Small batch (typical RL usage): single tile, masked ragged edge.
    x_small = jax.random.normal(kx, (2, 4), jnp.float32)
    out_small = jax.block_until_ready(dqn_forward(x_small, packed))
    ref_small = dqn_reference(x_small, params)
    assert out_small.shape == (7,)
    assert jnp.allclose(out_small, ref_small, atol=1e-5, rtol=1e-5)

    # 2) Larger ragged batch with the big default tile: one grid step total.
    key, kx2 = jax.random.split(key)
    x_big = jax.random.normal(kx2, (300, 4), jnp.float32)
    ref_big = dqn_reference(x_big, params)
    out_big = jax.block_until_ready(dqn_forward(x_big, packed))
    assert jnp.allclose(out_big, ref_big, atol=1e-4, rtol=1e-4)

    # 3) Same batch forced onto multiple tiles: exercises the pipelined "parallel"
    #    multi-tile path with last-tile-only masking.
    out_tiled = jax.block_until_ready(dqn_forward(x_big, packed, tb_cap=128))
    assert jnp.allclose(out_tiled, ref_big, atol=1e-4, rtol=1e-4)

    # 4) Exact tile multiple: unmasked ("none") multi-tile path.
    key, kx3 = jax.random.split(key)
    x_even = jax.random.normal(kx3, (256, 4), jnp.float32)
    out_even = jax.block_until_ready(dqn_forward(x_even, packed, tb_cap=128))
    assert jnp.allclose(out_even, dqn_reference(x_even, params), atol=1e-4, rtol=1e-4)

    # 5) Fixed-shape pre-padded input with a dynamic true batch size read from SMEM
    #    (retrace-free RL-loop path): junk padding rows must be masked out.
    x_pad = jnp.concatenate(
        [x_big, jnp.full((84, 4), 7.5, jnp.float32)], axis=0)        # (384, 4)
    out_dyn = jax.block_until_ready(dqn_forward(x_pad, packed, n=jnp.int32(300)))
    assert jnp.allclose(out_dyn, ref_big, atol=1e-4, rtol=1e-4)

    print("KERNEL_OK")
</pallas_src>

<mosaic_0001>
module attributes {stable_mosaic.version = 11 : i64} {
  func.func @dqn_kernel(%arg0: i32, %arg1: memref<1xi32, #tpu.memory_space<smem>>, %arg2: memref<32x128xf32, #tpu.memory_space<vmem>>, %arg3: memref<4x128xf32, #tpu.memory_space<vmem>>, %arg4: memref<1x8x128xf32, #tpu.memory_space<vmem>>) attributes {dimension_semantics = [#tpu.dimension_semantics<parallel>], iteration_bounds = array<i64: 1>, scalar_prefetch = 1 : i64, scratch_operands = 0 : i64, tpu.core_type = #tpu.core_type<tc>, window_params = [{pipeline_mode = #tpu.pipeline_mode<synchronous>, transform_indices = @transform_0, window_bounds = array<i64: 32, 128>}, {transform_indices = @transform_1, window_bounds = array<i64: 4, 128>}, {transform_indices = @transform_2, window_bounds = array<i64: 1, 8, 128>}]} {
    %c0 = arith.constant 0 : index
    %c0_0 = arith.constant 0 : index
    %0 = vector.load %arg2[%c0, %c0_0] : memref<32x128xf32, #tpu.memory_space<vmem>>, vector<8x4xf32>
    %c0_1 = arith.constant 0 : index
    %c32 = arith.constant 32 : index
    %1 = vector.load %arg2[%c0_1, %c32] : memref<32x128xf32, #tpu.memory_space<vmem>>, vector<8x1xf32>
    %c8 = arith.constant 8 : index
    %c0_2 = arith.constant 0 : index
    %2 = vector.load %arg2[%c8, %c0_2] : memref<32x128xf32, #tpu.memory_space<vmem>>, vector<16x8xf32>
    %c8_3 = arith.constant 8 : index
    %c32_4 = arith.constant 32 : index
    %3 = vector.load %arg2[%c8_3, %c32_4] : memref<32x128xf32, #tpu.memory_space<vmem>>, vector<16x1xf32>
    %c24 = arith.constant 24 : index
    %c0_5 = arith.constant 0 : index
    %4 = vector.load %arg2[%c24, %c0_5] : memref<32x128xf32, #tpu.memory_space<vmem>>, vector<8x16xf32>
    %c24_6 = arith.constant 24 : index
    %c32_7 = arith.constant 32 : index
    %5 = vector.load %arg2[%c24_6, %c32_7] : memref<32x128xf32, #tpu.memory_space<vmem>>, vector<8x1xf32>
    %c0_8 = arith.constant 0 : index
    %c0_9 = arith.constant 0 : index
    %6 = vector.load %arg3[%c0_8, %c0_9] : memref<4x128xf32, #tpu.memory_space<vmem>>, vector<4x128xf32>
    %cst = arith.constant dense<0.000000e+00> : vector<8x128xf32>
    %7 = tpu.matmul %0, %6, %cst {dimension_numbers = #tpu.dot_dimension_numbers<[1], [0], [0], [1], [0, 0, 1, 1], [], []>} : vector<8x4xf32>, vector<4x128xf32>, vector<8x128xf32> -> vector<8x128xf32>
    %8 = vector.broadcast %1 : vector<8x1xf32> to vector<8x128xf32>
    %9 = arith.addf %7, %8 : vector<8x128xf32>
    %cst_10 = arith.constant 0.000000e+00 : f32
    %10 = vector.broadcast %cst_10 : f32 to vector<8x128xf32>
    %11 = arith.maximumf %9, %10 : vector<8x128xf32>
    %cst_11 = arith.constant dense<0.000000e+00> : vector<16x128xf32>
    %12 = tpu.matmul %2, %11, %cst_11 {dimension_numbers = #tpu.dot_dimension_numbers<[1], [0], [0], [1], [0, 0, 1, 1], [], []>} : vector<16x8xf32>, vector<8x128xf32>, vector<16x128xf32> -> vector<16x128xf32>
    %13 = vector.broadcast %3 : vector<16x1xf32> to vector<16x128xf32>
    %14 = arith.addf %12, %13 : vector<16x128xf32>
    %cst_12 = arith.constant 0.000000e+00 : f32
    %15 = vector.broadcast %cst_12 : f32 to vector<16x128xf32>
    %16 = arith.maximumf %14, %15 : vector<16x128xf32>
    %cst_13 = arith.constant dense<0.000000e+00> : vector<8x128xf32>
    %17 = tpu.matmul %4, %16, %cst_13 {dimension_numbers = #tpu.dot_dimension_numbers<[1], [0], [0], [1], [0, 0, 1, 1], [], []>} : vector<8x16xf32>, vector<16x128xf32>, vector<8x128xf32> -> vector<8x128xf32>
    %18 = vector.broadcast %5 : vector<8x1xf32> to vector<8x128xf32>
    %19 = arith.addf %17, %18 : vector<8x128xf32>
    %c0_i32 = arith.constant 0 : i32
    %20 = arith.cmpi ne, %arg0, %c0_i32 : i32
    %21 = arith.extui %20 : i1 to i32
    %c0_i32_14 = arith.constant 0 : i32
    %22 = arith.cmpi ne, %21, %c0_i32_14 : i32
    scf.if %22 {
      %c0_17 = arith.constant 0 : index
      %c0_18 = arith.constant 0 : index
      %c0_19 = arith.constant 0 : index
      %26 = vector.load %arg4[%c0_17, %c0_18, %c0_19] : memref<1x8x128xf32, #tpu.memory_space<vmem>>, vector<1x8x128xf32>
      %27 = vector.shape_cast %26 : vector<1x8x128xf32> to vector<8x128xf32>
      %28 = vector.shape_cast %19 : vector<8x128xf32> to vector<1x8x128xf32>
      tpu.vector_store %arg4[%c0_17, %c0_18, %c0_19], %28 {strides = array<i32>} : memref<1x8x128xf32, #tpu.memory_space<vmem>>, vector<1x8x128xf32>,
    } else {
    }
    %c0_i32_15 = arith.constant 0 : i32
    %23 = arith.cmpi eq, %arg0, %c0_i32_15 : i32
    %24 = arith.extui %23 : i1 to i32
    %c0_i32_16 = arith.constant 0 : i32
    %25 = arith.cmpi ne, %24, %c0_i32_16 : i32
    scf.if %25 {
      %26 = tpu.iota {dimensions = array<i32: 1>} : vector<1x128xi32>
      %c128_i32 = arith.constant 128 : i32
      %27 = arith.muli %arg0, %c128_i32 : i32
      %28 = vector.broadcast %27 : i32 to vector<1x128xi32>
      %29 = arith.addi %28, %26 : vector<1x128xi32>
      %c0_17 = arith.constant 0 : index
      %30 = memref.load %arg1[%c0_17] : memref<1xi32, #tpu.memory_space<smem>>
      %31 = vector.broadcast %30 : i32 to vector<1x128xi32>
      %32 = arith.cmpi slt, %29, %31 : vector<1x128xi32>
      %cst_18 = arith.constant 0.000000e+00 : f32
      %33 = vector.shape_cast %32 : vector<1x128xi1> to vector<1x128xi1>
      %34 = vector.broadcast %33 : vector<1x128xi1> to vector<8x128xi1>
      %35 = vector.broadcast %cst_18 : f32 to vector<8x128xf32>
      %36 = arith.select %34, %19, %35 : vector<8x128xi1>, vector<8x128xf32>
      %c0_19 = arith.constant 0 : index
      %c0_20 = arith.constant 0 : index
      %c0_21 = arith.constant 0 : index
      %37 = vector.load %arg4[%c0_19, %c0_20, %c0_21] : memref<1x8x128xf32, #tpu.memory_space<vmem>>, vector<1x8x128xf32>
      %38 = vector.shape_cast %37 : vector<1x8x128xf32> to vector<8x128xf32>
      %39 = vector.shape_cast %36 : vector<8x128xf32> to vector<1x8x128xf32>
      tpu.vector_store %arg4[%c0_19, %c0_20, %c0_21], %39 {strides = array<i32>} : memref<1x8x128xf32, #tpu.memory_space<vmem>>, vector<1x8x128xf32>,
    } else {
    }
    return
  }
  func.func @transform_0(%arg0: i32, %arg1: memref<1xi32, #tpu.memory_space<smem>>) -> (i32, i32) {
    %c0_i32 = arith.constant 0 : i32
    %c0_i32_0 = arith.constant 0 : i32
    %c0_i32_1 = arith.constant 0 : i32
    return %c0_i32, %c0_i32_0 : i32, i32
  }
  func.func @transform_1(%arg0: i32, %arg1: memref<1xi32, #tpu.memory_space<smem>>) -> (i32, i32) {
    %c0_i32 = arith.constant 0 : i32
    %c0_i32_0 = arith.constant 0 : i32
    return %c0_i32, %arg0 : i32, i32
  }
  func.func @transform_2(%arg0: i32, %arg1: memref<1xi32, #tpu.memory_space<smem>>) -> (i32, i32, i32) {
    %c0_i32 = arith.constant 0 : i32
    %c0_i32_0 = arith.constant 0 : i32
    %c0_i32_1 = arith.constant 0 : i32
    return %arg0, %c0_i32, %c0_i32_0 : i32, i32, i32
  }
}

</mosaic_0001>

<llo_original>
// kernel: tpu_custom_call.1
$region0: #{tpu_custom_call.1}
  #allocation0 [shape = 'u32[]', space=smem, size = 0x4, offset = 0x4, fixed_abs, tag = 'smem constant byte address 0x4 - core index']
  #allocation1 [shape = 'u32[144,128]{1,0:T(1,128)}', space=vmem, size = 0x12000, scoped, tag = 'internal scratch']
  #allocation2 [shape = 's32[1]{0}', space=sflag, size = 0x4, scoped, tag = 'scoped memory for tpu_custom_call.1']
  #allocation3 [shape = 's32[1]{0:T(128)S(6)}', space=smem, size = 0x200, scoped, tag = 'prefetched SMEM operand 0']
  %s0 = inlined_call_operand.<no memory space> [shape: s32[1], index: 0, kind: input, shape index: {}]
  %s1 = inlined_call_operand.hbm [shape: f32[32,128], index: 1, kind: input, shape index: {}]
  %s2 = inlined_call_operand.vmem [shape: f32[4,2], index: 2, kind: input, shape index: {}]
  %s3 = inlined_call_operand.hbm [shape: f32[1,8,128], index: 3, kind: output, shape index: {}]
  %s4 = sld [smem:[#allocation0]]
  $region30: #{tpu_custom_call.1} parent=0
    _
  %s6 = ssub.s32 1, %s4
  %s7 = scalar_select 0, %s6, %s4
  %8 = sst [smem:[#allocation3]] %s0
  $region1: #{tpu_custom_call.1} parent=0
    #allocation4 [shape = 'u8[16384]{0}', space=vmem, size = 0x4000, scoped, tag = 'input window, operand 1, single buffered']
    #allocation5 [shape = 's32[1]{0}', space=sflag, size = 0x4, scoped, tag = 'scoped memory for tpu_custom_call.1']
    #allocation6 [shape = 's32[1]{0}', space=sflag, size = 0x4, scoped, tag = 'scoped memory for tpu_custom_call.1']
    #allocation7 [shape = 'u8[4096]{0}', space=vmem, size = 0x1000, scoped, tag = 'output window, operand 0, single buffered']
    %9 = vsyncpa [#allocation5], 0
    %10 = vsyncpa [#allocation6], 0
    // Predicated region
    $region2: #{tpu_custom_call.1} parent=1 // pred_check
      _
    $region3: #{tpu_custom_call.1} parent=1 // pred_check_branch
      %12 = sbr.rel (0) target = $region5
    $region4: #{tpu_custom_call.1} parent=1 // pred_region
      %s14 = ssub.s32 512, 512
      %15 = vsyncadd [#allocation5], %s14
      %s16 = sshll.u32 [#allocation4], 4
      %s17 = int_to_ptr.vmem [resolvable:$true] %s16
      %22 = dma.hbm_to_vmem [thread:$0]  %s1, 512, %s17, [#allocation5], 128, 128, 8
    $region5: #{tpu_custom_call.1} parent=1 // pred_fallthru
      _
    // Predicated region
    $region6: #{tpu_custom_call.1} parent=1 // pred_check
      _
    $region7: #{tpu_custom_call.1} parent=1 // pred_check_branch
      %24 = sbr.rel (0) target = $region9
    $region8: #{tpu_custom_call.1} parent=1 // pred_region
      _
    $region9: #{tpu_custom_call.1} parent=1 // pred_fallthru
      _
    // Predicated region
    $region10: #{tpu_custom_call.1} parent=1 // pred_check
      _
    $region11: #{tpu_custom_call.1} parent=1 // pred_check_branch
      %26 = sbr.rel (0) target = $region13
    $region12: #{tpu_custom_call.1} parent=1 // pred_region
      %27 = dma.done [#allocation5], 512
    $region13: #{tpu_custom_call.1} parent=1 // pred_fallthru
      _
    %v28 = vld [vmem:[#allocation4] sm:$0xff]
    %v29 = vld [vmem:[#allocation4 + $0x8] sm:$0xff]
    %v30 = vld [vmem:[#allocation4 + $0x10] sm:$0xff]
    %v31 = vld [vmem:[#allocation4 + $0x18] sm:$0xff]
    %v32 = vld [vmem:[%s2] sm:$0xf]
    %34 = vset.pattern.permute.xlu0 32
    %35 = vperm.xlu0 %34, %v28
    %v36 = vpop.permute.xlu0 %35
    %vm38 = vcmask 31744
    %v39 = vsel %vm38, %v28, 0
    %vm41 = vcmask 1043456
    %v43 = vsel %vm41, %v32, 0
    %45 = vmatprep.subr.mxu0 0.0
    %46 = vmatpush1.msra.mxu0 0.0
    %47 = vmatprep.subr.mxu0 0.0
    %48 = vmatpush1.msra.mxu0 0.0
    %49 = vmatprep.subr.mxu0 0.0
    %50 = vmatpush1.msra.mxu0 0.0
    %51 = vmatprep.subr.mxu0 0.0
    %52 = vmatpush1.msra.mxu0 0.0
    %53 = vmatprep.subr.mxu0 0.0
    %54 = vmatpush1.msra.mxu0 0.0
    %55 = vmatprep.subr.mxu0 0.0
    %56 = vmatpush1.msra.mxu0 0.0
    %57 = vmatprep.subr.mxu0 0.0
    %58 = vmatpush1.msra.mxu0 0.0
    %59 = vmatprep.subr.mxu0 0.0
    %60 = vmatpush1.msra.mxu0 0.0
    %61 = vmatprep.subr.mxu0 0.0
    %62 = vmatpush1.msra.mxu0 0.0
    %63 = vmatprep.subr.mxu0 0.0
    %64 = vmatpush1.msra.mxu0 0.0
    %65 = vmatprep.subr.mxu0 0.0
    %66 = vmatpush1.msra.mxu0 0.0
    %67 = vmatprep.subr.mxu0 0.0
    %68 = vmatpush1.msra.mxu0 0.0
    %69 = vmatprep.subr.mxu0 0.0
    %70 = vmatpush1.msra.mxu0 0.0
    %71 = vmatprep.subr.mxu0 0.0
    %72 = vmatpush1.msra.mxu0 0.0
    %73 = vmatprep.subr.mxu0 0.0
    %74 = vmatpush1.msra.mxu0 0.0
    %75 = vmatprep.subr.mxu0 0.0
    %76 = vmatpush1.msra.mxu0 %v43
    %77 = vmatprep.subr.mxu0 0.0
    %78 = vmatpush2.msra.mxu0 0.0
    %79 = vmatprep.subr.mxu0 0.0
    %80 = vmatpush2.msra.mxu0 0.0
    %81 = vmatprep.subr.mxu0 0.0
    %82 = vmatpush2.msra.mxu0 0.0
    %83 = vmatprep.subr.mxu0 0.0
    %84 = vmatpush2.msra.mxu0 0.0
    %85 = vmatprep.subr.mxu0 0.0
    %86 = vmatpush2.msra.mxu0 0.0
    %87 = vmatprep.subr.mxu0 0.0
    %88 = vmatpush2.msra.mxu0 0.0
    %89 = vmatprep.subr.mxu0 0.0
    %90 = vmatpush2.msra.mxu0 0.0
    %91 = vmatprep.subr.mxu0 0.0
    %92 = vmatpush2.msra.mxu0 0.0
    %93 = vmatprep.subr.mxu0 0.0
    %94 = vmatpush2.msra.mxu0 0.0
    %95 = vmatprep.subr.mxu0 0.0
    %96 = vmatpush2.msra.mxu0 0.0
    %97 = vmatprep.subr.mxu0 0.0
    %98 = vmatpush2.msra.mxu0 0.0
    %99 = vmatprep.subr.mxu0 0.0
    %100 = vmatpush2.msra.mxu0 0.0
    %101 = vmatprep.subr.mxu0 0.0
    %102 = vmatpush2.msra.mxu0 0.0
    %103 = vmatprep.subr.mxu0 0.0
    %104 = vmatpush2.msra.mxu0 0.0
    %105 = vmatprep.subr.mxu0 0.0
    %106 = vmatpush2.msra.mxu0 0.0
    %107 = vmatprep.subr.mxu0 0.0
    %108 = vmatpush2.msra.mxu0 0.0
    %109 = vmatprep.mubr.f32.mxu0 0.0
    %110 = vmatmul.mubr.f32.gmra.mxu0 %v39
    %v111 = vpop.f32.mrf.mxu0
    %v112 = vadd.f32 %v36, %v111
    %v113 = vpop.f32.mrf.mxu0
    %114 = vdwg.mxu0
    %v115 = vmax.f32 %v112, 0.0
    %117 = vset.pattern.permute.xlu0 32
    %118 = vperm.xlu0 %117, %v29
    %v119 = vpop.permute.xlu0 %118
    %122 = vset.pattern.permute.xlu0 32
    %123 = vperm.xlu0 %122, %v30
    %v124 = vpop.permute.xlu0 %123
    %vm126 = vcmask 64512
    %v127 = vsel %vm126, %v29, 0
    %v129 = vsel %vm126, %v30, 0
    %131 = vmatprep.subr.mxu0 0.0
    %132 = vmatpush1.msra.mxu0 0.0
    %133 = vmatprep.subr.mxu0 0.0
    %134 = vmatpush1.msra.mxu0 0.0
    %135 = vmatprep.subr.mxu0 0.0
    %136 = vmatpush1.msra.mxu0 0.0
    %137 = vmatprep.subr.mxu0 0.0
    %138 = vmatpush1.msra.mxu0 0.0
    %139 = vmatprep.subr.mxu0 0.0
    %140 = vmatpush1.msra.mxu0 0.0
    %141 = vmatprep.subr.mxu0 0.0
    %142 = vmatpush1.msra.mxu0 0.0
    %143 = vmatprep.subr.mxu0 0.0
    %144 = vmatpush1.msra.mxu0 0.0
    %145 = vmatprep.subr.mxu0 0.0
    %146 = vmatpush1.msra.mxu0 0.0
    %147 = vmatprep.subr.mxu0 0.0
    %148 = vmatpush1.msra.mxu0 0.0
    %149 = vmatprep.subr.mxu0 0.0
    %150 = vmatpush1.msra.mxu0 0.0
    %151 = vmatprep.subr.mxu0 0.0
    %152 = vmatpush1.msra.mxu0 0.0
    %153 = vmatprep.subr.mxu0 0.0
    %154 = vmatpush1.msra.mxu0 0.0
    %155 = vmatprep.subr.mxu0 0.0
    %156 = vmatpush1.msra.mxu0 0.0
    %157 = vmatprep.subr.mxu0 0.0
    %158 = vmatpush1.msra.mxu0 0.0
    %159 = vmatprep.subr.mxu0 0.0
    %160 = vmatpush1.msra.mxu0 0.0
    %161 = vmatprep.subr.mxu0 0.0
    %162 = vmatpush1.msra.mxu0 %v115
    %163 = vmatprep.subr.mxu0 0.0
    %164 = vmatpush2.msra.mxu0 0.0
    %165 = vmatprep.subr.mxu0 0.0
    %166 = vmatpush2.msra.mxu0 0.0
    %167 = vmatprep.subr.mxu0 0.0
    %168 = vmatpush2.msra.mxu0 0.0
    %169 = vmatprep.subr.mxu0 0.0
    %170 = vmatpush2.msra.mxu0 0.0
    %171 = vmatprep.subr.mxu0 0.0
    %172 = vmatpush2.msra.mxu0 0.0
    %173 = vmatprep.subr.mxu0 0.0
    %174 = vmatpush2.msra.mxu0 0.0
    %175 = vmatprep.subr.mxu0 0.0
    %176 = vmatpush2.msra.mxu0 0.0
    %177 = vmatprep.subr.mxu0 0.0
    %178 = vmatpush2.msra.mxu0 0.0
    %179 = vmatprep.subr.mxu0 0.0
    %180 = vmatpush2.msra.mxu0 0.0
    %181 = vmatprep.subr.mxu0 0.0
    %182 = vmatpush2.msra.mxu0 0.0
    %183 = vmatprep.subr.mxu0 0.0
    %184 = vmatpush2.msra.mxu0 0.0
    %185 = vmatprep.subr.mxu0 0.0
    %186 = vmatpush2.msra.mxu0 0.0
    %187 = vmatprep.subr.mxu0 0.0
    %188 = vmatpush2.msra.mxu0 0.0
    %189 = vmatprep.subr.mxu0 0.0
    %190 = vmatpush2.msra.mxu0 0.0
    %191 = vmatprep.subr.mxu0 0.0
    %192 = vmatpush2.msra.mxu0 0.0
    %193 = vmatprep.subr.mxu0 0.0
    %194 = vmatpush2.msra.mxu0 0.0
    %195 = vmatprep.mubr.f32.mxu0 0.0
    %196 = vmatmul.mubr.f32.gmra.mxu0 %v127
    %v197 = vpop.f32.mrf.mxu0
    %v198 = vadd.f32 %v119, %v197
    %v199 = vpop.f32.mrf.mxu0
    %200 = vmatprep.mubr.f32.mxu0 0.0
    %201 = vmatmul.mubr.f32.gmra.mxu0 %v129
    %v202 = vpop.f32.mrf.mxu0
    %v203 = vadd.f32 %v124, %v202
    %v204 = vpop.f32.mrf.mxu0
    %205 = vdwg.mxu0
    %v206 = vmax.f32 %v198, 0.0
    %v207 = vmax.f32 %v203, 0.0
    %209 = vset.pattern.permute.xlu0 32
    %210 = vperm.xlu0 %209, %v31
    %v211 = vpop.permute.xlu0 %210
    %vm213 = vcmask 130048
    %v214 = vsel %vm213, %v31, 0
    %216 = vmatprep.subr.mxu0 0.0
    %217 = vmatpush1.msra.mxu0 0.0
    %218 = vmatprep.subr.mxu0 0.0
    %219 = vmatpush1.msra.mxu0 0.0
    %220 = vmatprep.subr.mxu0 0.0
    %221 = vmatpush1.msra.mxu0 0.0
    %222 = vmatprep.subr.mxu0 0.0
    %223 = vmatpush1.msra.mxu0 0.0
    %224 = vmatprep.subr.mxu0 0.0
    %225 = vmatpush1.msra.mxu0 0.0
    %226 = vmatprep.subr.mxu0 0.0
    %227 = vmatpush1.msra.mxu0 0.0
    %228 = vmatprep.subr.mxu0 0.0
    %229 = vmatpush1.msra.mxu0 0.0
    %230 = vmatprep.subr.mxu0 0.0
    %231 = vmatpush1.msra.mxu0 0.0
    %232 = vmatprep.subr.mxu0 0.0
    %233 = vmatpush1.msra.mxu0 0.0
    %234 = vmatprep.subr.mxu0 0.0
    %235 = vmatpush1.msra.mxu0 0.0
    %236 = vmatprep.subr.mxu0 0.0
    %237 = vmatpush1.msra.mxu0 0.0
    %238 = vmatprep.subr.mxu0 0.0
    %239 = vmatpush1.msra.mxu0 0.0
    %240 = vmatprep.subr.mxu0 0.0
    %241 = vmatpush1.msra.mxu0 0.0
    %242 = vmatprep.subr.mxu0 0.0
    %243 = vmatpush1.msra.mxu0 0.0
    %244 = vmatprep.subr.mxu0 0.0
    %245 = vmatpush1.msra.mxu0 %v207
    %246 = vmatprep.subr.mxu0 0.0
    %247 = vmatpush1.msra.mxu0 %v206
    %248 = vmatprep.subr.mxu0 0.0
    %249 = vmatpush2.msra.mxu0 0.0
    %250 = vmatprep.subr.mxu0 0.0
    %251 = vmatpush2.msra.mxu0 0.0
    %252 = vmatprep.subr.mxu0 0.0
    %253 = vmatpush2.msra.mxu0 0.0
    %254 = vmatprep.subr.mxu0 0.0
    %255 = vmatpush2.msra.mxu0 0.0
    %256 = vmatprep.subr.mxu0 0.0
    %257 = vmatpush2.msra.mxu0 0.0
    %258 = vmatprep.subr.mxu0 0.0
    %259 = vmatpush2.msra.mxu0 0.0
    %260 = vmatprep.subr.mxu0 0.0
    %261 = vmatpush2.msra.mxu0 0.0
    %262 = vmatprep.subr.mxu0 0.0
    %263 = vmatpush2.msra.mxu0 0.0
    %264 = vmatprep.subr.mxu0 0.0
    %265 = vmatpush2.msra.mxu0 0.0
    %266 = vmatprep.subr.mxu0 0.0
    %267 = vmatpush2.msra.mxu0 0.0
    %268 = vmatprep.subr.mxu0 0.0
    %269 = vmatpush2.msra.mxu0 0.0
    %270 = vmatprep.subr.mxu0 0.0
    %271 = vmatpush2.msra.mxu0 0.0
    %272 = vmatprep.subr.mxu0 0.0
    %273 = vmatpush2.msra.mxu0 0.0
    %274 = vmatprep.subr.mxu0 0.0
    %275 = vmatpush2.msra.mxu0 0.0
    %276 = vmatprep.subr.mxu0 0.0
    %277 = vmatpush2.msra.mxu0 0.0
    %278 = vmatprep.subr.mxu0 0.0
    %279 = vmatpush2.msra.mxu0 0.0
    %280 = vmatprep.mubr.f32.mxu0 0.0
    %281 = vmatmul.mubr.f32.gmra.mxu0 %v214
    %v282 = vpop.f32.mrf.mxu0
    %v283 = vadd.f32 %v211, %v282
    %v284 = vpop.f32.mrf.mxu0
    %285 = vdwg.mxu0
    %p286 = scmp.ne.s32.totalorder 0, 0
    // Predicated region
    $region14: #{tpu_custom_call.1} parent=1 // pred_check
      %p287 = pneg %p286
    $region15: #{tpu_custom_call.1} parent=1 // pred_check_branch
      %289 = sbr.rel (%p287) target = $region17
    $region16: #{tpu_custom_call.1} parent=1 // pred_region
      %290 = vst [vmem:[#allocation7] sm:$0xff] %v283
    $region17: #{tpu_custom_call.1} parent=1 // pred_fallthru
      _
    %p291 = scmp.eq.s32.totalorder 0, 0
    // Predicated region
    $region18: #{tpu_custom_call.1} parent=1 // pred_check
      %p292 = pneg %p291
    $region19: #{tpu_custom_call.1} parent=1 // pred_check_branch
      %294 = sbr.rel (%p292) target = $region21
    $region20: #{tpu_custom_call.1} parent=1 // pred_region
      %v295 = vlaneseq
      %v296 = vand.u32 %v295, 127
      %s297 = smul.u32 0, 128
      %v298 = vstv %s297
      %v299 = vadd.s32 %v298, %v296
      %s300 = sld [smem:[#allocation3]]
      %v301 = vstv %s300
      %vm302 = vcmp.lt.s32.totalorder %v299, %v301
      %v303 = vsel %vm302, 1, 0
      %vm304 = vcmp.eq.s32.totalorder %v303, 1
      %v305 = vsel %vm304, %v283, 0.0
      %306 = vst [vmem:[#allocation7] sm:$0xff] %v305
    $region21: #{tpu_custom_call.1} parent=1 // pred_fallthru
      _
    // Predicated region
    $region22: #{tpu_custom_call.1} parent=1 // pred_check
      _
    $region23: #{tpu_custom_call.1} parent=1 // pred_check_branch
      %308 = sbr.rel (0) target = $region25
    $region24: #{tpu_custom_call.1} parent=1 // pred_region
      %s310 = ssub.s32 128, 128
      %311 = vsyncadd [#allocation6], %s310
      %s313 = sshll.u32 [#allocation7], 4
      %s314 = int_to_ptr.vmem [resolvable:$true] %s313
      %316 = dma.vmem_to_hbm [thread:$0]  %s314, 128, %s3, [#allocation6]
    $region25: #{tpu_custom_call.1} parent=1 // pred_fallthru
      _
    // Predicated region
    $region26: #{tpu_custom_call.1} parent=1 // pred_check
      _
    $region27: #{tpu_custom_call.1} parent=1 // pred_check_branch
      %318 = sbr.rel (0) target = $region29
    $region28: #{tpu_custom_call.1} parent=1 // pred_region
      %319 = dma.done [#allocation6], 128
    $region29: #{tpu_custom_call.1} parent=1 // pred_fallthru
      _
    %320 = vsyncpa [#allocation5], 1
    %321 = vsyncpa [#allocation6], 1

</llo_original>
